<compile_context>
chip_gen: v7x
topology: tpu7x:2x2x1
jax: 0.10.0
libtpu: 0.0.40
codegen_flags: <defaults>
</compile_context>

<pallas_src>
import jax
import jax.numpy as jnp
from jax.experimental import pallas as pl
from jax.experimental.pallas import tpu as pltpu


def _round_up(x, m):
    return ((x + m - 1) // m) * m


def _edge_mlp_kernel(src_ref, tgt_ref, ps_ref, pt_ref, w2_ref, b2_ref, w3_ref,
                     o_ref):
    # src_ref / tgt_ref : (1, TE)  int32   edge endpoint node ids (lane-dense)
    # ps_ref / pt_ref   : (H, Np)  compute dtype  projected node tables
    #                               (ps already contains the layer-1 bias b1)
    # w2_ref            : (Hh, H)  compute dtype  (transposed Linear-2 weight)
    # b2_ref            : (Hh, 1)  f32
    # w3_ref            : (1, Hh)  compute dtype  (transposed Linear-3 weight)
    # o_ref             : (1, TE)  f32 logits (b3 added by the wrapper)
    n_pad = ps_ref.shape[1]
    te = src_ref.shape[1]
    cdt = ps_ref.dtype

    # In-kernel gather: one-hot selection matrices, consumed by the idle MXU.
    node_ids = jax.lax.broadcasted_iota(jnp.int32, (n_pad, te), 0)
    one = jnp.ones((), dtype=cdt)
    zero = jnp.zeros((), dtype=cdt)
    oh_src = jnp.where(node_ids == src_ref[...], one, zero)       # (Np, TE)
    oh_tgt = jnp.where(node_ids == tgt_ref[...], one, zero)       # (Np, TE)

    # Layer 1: gather + Linear(2C -> H) fused via the precomputed tables.
    h1 = jnp.dot(ps_ref[...], oh_src, preferred_element_type=jnp.float32)
    h1 = h1 + jnp.dot(pt_ref[...], oh_tgt, preferred_element_type=jnp.float32)
    h1 = jnp.maximum(h1, 0.0)                                      # (H, TE) f32

    # Layer 2: Linear(H -> Hh) + ReLU.  (Dropout = identity at inference.)
    h2 = jnp.dot(w2_ref[...], h1.astype(cdt),
                 preferred_element_type=jnp.float32)
    h2 = jnp.maximum(h2 + b2_ref[...], 0.0)                        # (Hh, TE) f32

    # Layer 3: Linear(Hh -> 1), fused with the lane-dense output rewrite.
    logits = jnp.dot(w3_ref[...], h2.astype(cdt),
                     preferred_element_type=jnp.float32)           # (1, TE)
    o_ref[...] = logits.astype(o_ref.dtype)


def _edge_mlp(node_embeddings, src_idx, tgt_idx, params, *,
              compute_dtype=jnp.bfloat16, max_tile_e=4096):
    """3-layer edge MLP over (src, tgt) node-index pairs -> (E,) f32 logits."""
    E = src_idx.shape[0]
    if E == 0:                               # empty move set: nothing to score
        return jnp.zeros((0,), jnp.float32)

    N, C = node_embeddings.shape
    H = params["w1"].shape[1]
    Hh = params["w2"].shape[1]

    # --- tiny per-node precompute: fuses the gather + Linear-1 into the kernel.
    x = node_embeddings.astype(jnp.float32)
    proj_src = x @ params["w1"][:C] + params["b1"]                 # (N, H)
    proj_tgt = x @ params["w1"][C:]                                # (N, H)

    n_pad = _round_up(max(N, 8), 8)
    if n_pad != N:
        proj_src = jnp.pad(proj_src, ((0, n_pad - N), (0, 0)))
        proj_tgt = jnp.pad(proj_tgt, ((0, n_pad - N), (0, 0)))
    ps = proj_src.T.astype(compute_dtype)                          # (H, Np)
    pt = proj_tgt.T.astype(compute_dtype)                          # (H, Np)

    w2t = params["w2"].T.astype(compute_dtype)                     # (Hh, H)
    b2c = params["b2"].reshape(Hh, 1).astype(jnp.float32)          # (Hh, 1)
    w3r = params["w3"].T.astype(compute_dtype)                     # (1, Hh)

    itemsize = jnp.dtype(compute_dtype).itemsize
    # Resident-table path only (tiny graphs); see TODO at top for huge graphs.
    assert 2 * H * n_pad * itemsize <= 8 * 1024 * 1024, (
        "node projection table too large for the resident-VMEM path")

    # --- edge tiling: large lane-aligned tiles, balanced to minimize tail pad,
    #     >= 2 grid steps when there is enough work (v7x has 2 TensorCores),
    #     and one-hot intermediates capped well inside VMEM.
    onehot_bytes_per_edge = 2 * n_pad * itemsize
    vmem_cap_tile = max(128,
                        (8 * 1024 * 1024 // onehot_bytes_per_edge) // 128 * 128)
    E128 = _round_up(E, 128)
    tile_e = max(128, min(max_tile_e, vmem_cap_tile, E128))
    n_tiles = -(-E128 // tile_e)
    if n_tiles == 1 and E128 >= 1024:
        n_tiles = 2
    tile_e = _round_up(-(-E128 // n_tiles), 128)
    E_pad = tile_e * n_tiles

    src = src_idx.astype(jnp.int32).reshape(1, E)
    tgt = tgt_idx.astype(jnp.int32).reshape(1, E)
    if E_pad != E:
        # Padded edges point at node 0; their logits are sliced off below.
        src = jnp.pad(src, ((0, 0), (0, E_pad - E)))
        tgt = jnp.pad(tgt, ((0, 0), (0, E_pad - E)))

    cost = pl.CostEstimate(
        flops=2 * E_pad * (2 * n_pad * H + H * Hh + Hh),
        transcendentals=0,
        bytes_accessed=2 * E_pad * 4                         # int32 indices
        + (2 * H * n_pad + Hh * H + Hh) * itemsize           # resident tables
        + Hh * 4 + E_pad * 4,                                # b2 + f32 logits
    )

    out = pl.pallas_call(
        _edge_mlp_kernel,
        out_shape=jax.ShapeDtypeStruct((1, E_pad), jnp.float32),
        grid_spec=pltpu.PrefetchScalarGridSpec(
            num_scalar_prefetch=0,
            grid=(n_tiles,),
            in_specs=[
                pl.BlockSpec((1, tile_e), lambda i: (0, i)),   # src indices
                pl.BlockSpec((1, tile_e), lambda i: (0, i)),   # tgt indices
                pl.BlockSpec((H, n_pad), lambda i: (0, 0)),    # proj_src (+b1)
                pl.BlockSpec((H, n_pad), lambda i: (0, 0)),    # proj_tgt
                pl.BlockSpec((Hh, H), lambda i: (0, 0)),       # W2^T
                pl.BlockSpec((Hh, 1), lambda i: (0, 0)),       # b2
                pl.BlockSpec((1, Hh), lambda i: (0, 0)),       # W3^T
            ],
            out_specs=pl.BlockSpec((1, tile_e), lambda i: (0, i)),
        ),
        compiler_params=pltpu.CompilerParams(
            dimension_semantics=("parallel",),
            vmem_limit_bytes=32 * 1024 * 1024,
        ),
        cost_estimate=cost,
    )(src, tgt, ps, pt, w2t, b2c, w3r)

    return out[0, :E] + params["b3"].reshape(()).astype(jnp.float32)


def move_predictor_forward(node_embeddings, edge_index, move_edge_idxs, params,
                           *, compute_dtype=jnp.bfloat16, max_tile_e=4096):
    """Reproduces MovePredictor.forward (inference mode; dropout = identity)."""
    candidate_moves = edge_index[:, move_edge_idxs]        # (2, E)
    src = candidate_moves[0]                               # source node indices
    tgt = candidate_moves[1]                               # target node indices
    return _edge_mlp(node_embeddings, src, tgt, params,
                     compute_dtype=compute_dtype, max_tile_e=max_tile_e)


def init_params(key, in_channels, hidden_dim):
    k1, k2, k3, k4, k5, k6 = jax.random.split(key, 6)
    two_c = 2 * in_channels
    hh = hidden_dim // 2
    # Weights stored as [in, out] (PyTorch Linear weight is [out, in]).
    return {
        "w1": jax.random.normal(k1, (two_c, hidden_dim), jnp.float32) * 0.1,
        "b1": jax.random.normal(k2, (1, hidden_dim), jnp.float32) * 0.01,
        "w2": jax.random.normal(k3, (hidden_dim, hh), jnp.float32) * 0.1,
        "b2": jax.random.normal(k4, (1, hh), jnp.float32) * 0.01,
        "w3": jax.random.normal(k5, (hh, 1), jnp.float32) * 0.1,
        "b3": jax.random.normal(k6, (1, 1), jnp.float32) * 0.01,
    }


if __name__ == "__main__":
    key = jax.random.PRNGKey(0)
    k_emb, k_par, k_edge, k_emb2, k_edge2 = jax.random.split(key, 5)

    def reference(node_embeddings, edge_index, move_edge_idxs, params):
        cm = edge_index[:, move_edge_idxs].T
        x = jnp.concatenate(
            [node_embeddings[cm[:, 0]], node_embeddings[cm[:, 1]]], axis=-1)
        h = jnp.maximum(x @ params["w1"] + params["b1"], 0.0)
        h = jnp.maximum(h @ params["w2"] + params["b2"], 0.0)
        return (h @ params["w3"] + params["b3"])[:, 0]

    in_channels, hidden_dim = 8, 32
    params = init_params(k_par, in_channels, hidden_dim)

    # Tolerances: f32 path allows for XLA/Mosaic MXU precision-mode differences
    # (bf16-pass f32 matmuls); bf16 path allows the bf16 cast of tables/weights.
    F32_TOL = dict(atol=2e-3, rtol=2e-3)
    BF16_TOL = dict(atol=5e-2, rtol=5e-2)

    # --- case 1: tiny graph (single tile, ragged padding), f32 compute ------
    num_nodes, num_edges_total, num_move_edges = 16, 20, 8
    node_embeddings = jax.random.normal(
        k_emb, (num_nodes, in_channels), jnp.float32)
    edge_index = jax.random.randint(
        k_edge, (2, num_edges_total), 0, num_nodes, dtype=jnp.int32)
    move_edge_idxs = jnp.arange(0, num_move_edges, dtype=jnp.int32) * 2

    logits = move_predictor_forward(
        node_embeddings, edge_index, move_edge_idxs, params,
        compute_dtype=jnp.float32)
    logits = jax.block_until_ready(logits)
    ref = reference(node_embeddings, edge_index, move_edge_idxs, params)
    assert logits.shape == (num_move_edges,)
    assert jnp.allclose(logits, ref, **F32_TOL)

    # --- case 2: larger edge set (ragged last tile), f32 compute -------------
    num_nodes2, num_edges_total2, num_move_edges2 = 64, 800, 600
    node_embeddings2 = jax.random.normal(
        k_emb2, (num_nodes2, in_channels), jnp.float32)
    edge_index2 = jax.random.randint(
        k_edge2, (2, num_edges_total2), 0, num_nodes2, dtype=jnp.int32)
    move_edge_idxs2 = jnp.arange(num_move_edges2, dtype=jnp.int32)

    logits2 = move_predictor_forward(
        node_embeddings2, edge_index2, move_edge_idxs2, params,
        compute_dtype=jnp.float32)
    logits2 = jax.block_until_ready(logits2)
    ref2 = reference(node_embeddings2, edge_index2, move_edge_idxs2, params)
    assert logits2.shape == (num_move_edges2,)
    assert jnp.allclose(logits2, ref2, **F32_TOL)

    # --- case 3: default bf16 compute path (MXU dtype on v5e/v6e/v7x) --------
    logits_bf16 = move_predictor_forward(
        node_embeddings2, edge_index2, move_edge_idxs2, params)
    logits_bf16 = jax.block_until_ready(logits_bf16)
    assert jnp.allclose(logits_bf16, ref2, **BF16_TOL)

    # --- case 4: force a multi-tile parallel grid (>= 2 grid steps) ---------
    logits_mt = move_predictor_forward(
        node_embeddings2, edge_index2, move_edge_idxs2, params,
        compute_dtype=jnp.float32, max_tile_e=256)
    logits_mt = jax.block_until_ready(logits_mt)
    assert jnp.allclose(logits_mt, ref2, **F32_TOL)

    # --- case 5: empty move set (previously divided by zero) ----------------
    empty_idxs = jnp.zeros((0,), dtype=jnp.int32)
    logits_empty = move_predictor_forward(
        node_embeddings2, edge_index2, empty_idxs, params)
    logits_empty = jax.block_until_ready(logits_empty)
    assert logits_empty.shape == (0,)

    print("KERNEL_OK")
</pallas_src>

<mosaic_0001>
module attributes {stable_mosaic.version = 11 : i64} {
  func.func @_edge_mlp_kernel(%arg0: i32, %arg1: memref<1x128xi32, #tpu.memory_space<vmem>>, %arg2: memref<1x128xi32, #tpu.memory_space<vmem>>, %arg3: memref<32x16xf32, #tpu.memory_space<vmem>>, %arg4: memref<32x16xf32, #tpu.memory_space<vmem>>, %arg5: memref<16x32xf32, #tpu.memory_space<vmem>>, %arg6: memref<16x1xf32, #tpu.memory_space<vmem>>, %arg7: memref<1x16xf32, #tpu.memory_space<vmem>>, %arg8: memref<1x128xf32, #tpu.memory_space<vmem>>) attributes {dimension_semantics = [#tpu.dimension_semantics<parallel>], iteration_bounds = array<i64: 1>, scalar_prefetch = 0 : i64, scratch_operands = 0 : i64, tpu.core_type = #tpu.core_type<tc>, window_params = [{transform_indices = @transform_0, window_bounds = array<i64: 1, 128>}, {transform_indices = @transform_1, window_bounds = array<i64: 1, 128>}, {pipeline_mode = #tpu.pipeline_mode<synchronous>, transform_indices = @transform_2, window_bounds = array<i64: 32, 16>}, {pipeline_mode = #tpu.pipeline_mode<synchronous>, transform_indices = @transform_3, window_bounds = array<i64: 32, 16>}, {pipeline_mode = #tpu.pipeline_mode<synchronous>, transform_indices = @transform_4, window_bounds = array<i64: 16, 32>}, {pipeline_mode = #tpu.pipeline_mode<synchronous>, transform_indices = @transform_5, window_bounds = array<i64: 16, 1>}, {pipeline_mode = #tpu.pipeline_mode<synchronous>, transform_indices = @transform_6, window_bounds = array<i64: 1, 16>}, {transform_indices = @transform_7, window_bounds = array<i64: 1, 128>}]} {
    %0 = tpu.iota {dimensions = array<i32: 0>} : vector<16x128xi32>
    %c0 = arith.constant 0 : index
    %c0_0 = arith.constant 0 : index
    %1 = vector.load %arg1[%c0, %c0_0] : memref<1x128xi32, #tpu.memory_space<vmem>>, vector<1x128xi32>
    %2 = vector.broadcast %1 : vector<1x128xi32> to vector<16x128xi32>
    %3 = arith.cmpi eq, %0, %2 : vector<16x128xi32>
    %cst = arith.constant 1.000000e+00 : f32
    %cst_1 = arith.constant 0.000000e+00 : f32
    %4 = vector.broadcast %cst : f32 to vector<16x128xf32>
    %5 = vector.broadcast %cst_1 : f32 to vector<16x128xf32>
    %6 = arith.select %3, %4, %5 : vector<16x128xi1>, vector<16x128xf32>
    %c0_2 = arith.constant 0 : index
    %c0_3 = arith.constant 0 : index
    %7 = vector.load %arg2[%c0_2, %c0_3] : memref<1x128xi32, #tpu.memory_space<vmem>>, vector<1x128xi32>
    %8 = vector.broadcast %7 : vector<1x128xi32> to vector<16x128xi32>
    %9 = arith.cmpi eq, %0, %8 : vector<16x128xi32>
    %cst_4 = arith.constant 1.000000e+00 : f32
    %cst_5 = arith.constant 0.000000e+00 : f32
    %10 = vector.broadcast %cst_4 : f32 to vector<16x128xf32>
    %11 = vector.broadcast %cst_5 : f32 to vector<16x128xf32>
    %12 = arith.select %9, %10, %11 : vector<16x128xi1>, vector<16x128xf32>
    %c0_6 = arith.constant 0 : index
    %c0_7 = arith.constant 0 : index
    %13 = vector.load %arg3[%c0_6, %c0_7] : memref<32x16xf32, #tpu.memory_space<vmem>>, vector<32x16xf32>
    %cst_8 = arith.constant dense<0.000000e+00> : vector<32x128xf32>
    %14 = tpu.matmul %13, %6, %cst_8 {dimension_numbers = #tpu.dot_dimension_numbers<[1], [0], [0], [1], [0, 0, 1, 1], [], []>} : vector<32x16xf32>, vector<16x128xf32>, vector<32x128xf32> -> vector<32x128xf32>
    %c0_9 = arith.constant 0 : index
    %c0_10 = arith.constant 0 : index
    %15 = vector.load %arg4[%c0_9, %c0_10] : memref<32x16xf32, #tpu.memory_space<vmem>>, vector<32x16xf32>
    %cst_11 = arith.constant dense<0.000000e+00> : vector<32x128xf32>
    %16 = tpu.matmul %15, %12, %cst_11 {dimension_numbers = #tpu.dot_dimension_numbers<[1], [0], [0], [1], [0, 0, 1, 1], [], []>} : vector<32x16xf32>, vector<16x128xf32>, vector<32x128xf32> -> vector<32x128xf32>
    %17 = arith.addf %14, %16 : vector<32x128xf32>
    %cst_12 = arith.constant 0.000000e+00 : f32
    %18 = vector.broadcast %cst_12 : f32 to vector<32x128xf32>
    %19 = arith.maximumf %17, %18 : vector<32x128xf32>
    %c0_13 = arith.constant 0 : index
    %c0_14 = arith.constant 0 : index
    %20 = vector.load %arg5[%c0_13, %c0_14] : memref<16x32xf32, #tpu.memory_space<vmem>>, vector<16x32xf32>
    %cst_15 = arith.constant dense<0.000000e+00> : vector<16x128xf32>
    %21 = tpu.matmul %20, %19, %cst_15 {dimension_numbers = #tpu.dot_dimension_numbers<[1], [0], [0], [1], [0, 0, 1, 1], [], []>} : vector<16x32xf32>, vector<32x128xf32>, vector<16x128xf32> -> vector<16x128xf32>
    %c0_16 = arith.constant 0 : index
    %c0_17 = arith.constant 0 : index
    %22 = vector.load %arg6[%c0_16, %c0_17] : memref<16x1xf32, #tpu.memory_space<vmem>>, vector<16x1xf32>
    %23 = vector.broadcast %22 : vector<16x1xf32> to vector<16x128xf32>
    %24 = arith.addf %21, %23 : vector<16x128xf32>
    %cst_18 = arith.constant 0.000000e+00 : f32
    %25 = vector.broadcast %cst_18 : f32 to vector<16x128xf32>
    %26 = arith.maximumf %24, %25 : vector<16x128xf32>
    %c0_19 = arith.constant 0 : index
    %c0_20 = arith.constant 0 : index
    %27 = vector.load %arg7[%c0_19, %c0_20] : memref<1x16xf32, #tpu.memory_space<vmem>>, vector<1x16xf32>
    %cst_21 = arith.constant dense<0.000000e+00> : vector<1x128xf32>
    %28 = tpu.matmul %27, %26, %cst_21 {dimension_numbers = #tpu.dot_dimension_numbers<[1], [0], [0], [1], [0, 0, 1, 1], [], []>} : vector<1x16xf32>, vector<16x128xf32>, vector<1x128xf32> -> vector<1x128xf32>
    %c0_22 = arith.constant 0 : index
    %c0_23 = arith.constant 0 : index
    %29 = vector.load %arg8[%c0_22, %c0_23] : memref<1x128xf32, #tpu.memory_space<vmem>>, vector<1x128xf32>
    tpu.vector_store %arg8[%c0_22, %c0_23], %28 {strides = array<i32>} : memref<1x128xf32, #tpu.memory_space<vmem>>, vector<1x128xf32>,
    return
  }
  func.func @transform_0(%arg0: i32) -> (i32, i32) {
    %c0_i32 = arith.constant 0 : i32
    %c0_i32_0 = arith.constant 0 : i32
    return %c0_i32, %arg0 : i32, i32
  }
  func.func @transform_1(%arg0: i32) -> (i32, i32) {
    %c0_i32 = arith.constant 0 : i32
    %c0_i32_0 = arith.constant 0 : i32
    return %c0_i32, %arg0 : i32, i32
  }
  func.func @transform_2(%arg0: i32) -> (i32, i32) {
    %c0_i32 = arith.constant 0 : i32
    %c0_i32_0 = arith.constant 0 : i32
    %c0_i32_1 = arith.constant 0 : i32
    return %c0_i32, %c0_i32_0 : i32, i32
  }
  func.func @transform_3(%arg0: i32) -> (i32, i32) {
    %c0_i32 = arith.constant 0 : i32
    %c0_i32_0 = arith.constant 0 : i32
    %c0_i32_1 = arith.constant 0 : i32
    return %c0_i32, %c0_i32_0 : i32, i32
  }
  func.func @transform_4(%arg0: i32) -> (i32, i32) {
    %c0_i32 = arith.constant 0 : i32
    %c0_i32_0 = arith.constant 0 : i32
    %c0_i32_1 = arith.constant 0 : i32
    return %c0_i32, %c0_i32_0 : i32, i32
  }
  func.func @transform_5(%arg0: i32) -> (i32, i32) {
    %c0_i32 = arith.constant 0 : i32
    %c0_i32_0 = arith.constant 0 : i32
    %c0_i32_1 = arith.constant 0 : i32
    return %c0_i32, %c0_i32_0 : i32, i32
  }
  func.func @transform_6(%arg0: i32) -> (i32, i32) {
    %c0_i32 = arith.constant 0 : i32
    %c0_i32_0 = arith.constant 0 : i32
    %c0_i32_1 = arith.constant 0 : i32
    return %c0_i32, %c0_i32_0 : i32, i32
  }
  func.func @transform_7(%arg0: i32) -> (i32, i32) {
    %c0_i32 = arith.constant 0 : i32
    %c0_i32_0 = arith.constant 0 : i32
    return %c0_i32, %arg0 : i32, i32
  }
}

</mosaic_0001>

<llo_original>
// kernel: tpu_custom_call.1
$region0: #{tpu_custom_call.1}
  #allocation0 [shape = 'u32[]', space=smem, size = 0x4, offset = 0x4, fixed_abs, tag = 'smem constant byte address 0x4 - core index']
  #allocation1 [shape = 'u32[144,128]{1,0:T(1,128)}', space=vmem, size = 0x12000, scoped, tag = 'internal scratch']
  %s0 = inlined_call_operand.vmem [shape: s32[1,128], index: 0, kind: input, shape index: {}]
  %s1 = inlined_call_operand.vmem [shape: s32[1,128], index: 1, kind: input, shape index: {}]
  %s2 = inlined_call_operand.vmem [shape: f32[32,16], index: 2, kind: input, shape index: {}]
  %s3 = inlined_call_operand.vmem [shape: f32[32,16], index: 3, kind: input, shape index: {}]
  %s4 = inlined_call_operand.vmem [shape: f32[16,32], index: 4, kind: input, shape index: {}]
  %s5 = inlined_call_operand.vmem [shape: f32[16,1], index: 5, kind: input, shape index: {}]
  %s6 = inlined_call_operand.vmem [shape: f32[1,16], index: 6, kind: input, shape index: {}]
  %s7 = inlined_call_operand.hbm [shape: f32[1,128], index: 7, kind: output, shape index: {}]
  %s8 = sld [smem:[#allocation0]]
  $region38: #{tpu_custom_call.1} parent=0
    _
  %s10 = ssub.s32 1, %s8
  %s11 = scalar_select 0, %s10, %s8
  $region1: #{tpu_custom_call.1} parent=0
    #allocation2 [shape = 'u8[512]{0}', space=vmem, size = 0x400, scoped, tag = 'output window, operand 0, single buffered']
    #allocation3 [shape = 's32[1]{0}', space=sflag, size = 0x4, scoped, tag = 'scoped memory for tpu_custom_call.1']
    %12 = vsyncpa [#allocation3], 0
    // Predicated region
    $region2: #{tpu_custom_call.1} parent=1 // pred_check
      _
    $region3: #{tpu_custom_call.1} parent=1 // pred_check_branch
      %14 = sbr.rel (0) target = $region5
    $region4: #{tpu_custom_call.1} parent=1 // pred_region
      _
    $region5: #{tpu_custom_call.1} parent=1 // pred_fallthru
      _
    // Predicated region
    $region6: #{tpu_custom_call.1} parent=1 // pred_check
      _
    $region7: #{tpu_custom_call.1} parent=1 // pred_check_branch
      %16 = sbr.rel (0) target = $region9
    $region8: #{tpu_custom_call.1} parent=1 // pred_region
      _
    $region9: #{tpu_custom_call.1} parent=1 // pred_fallthru
      _
    // Predicated region
    $region10: #{tpu_custom_call.1} parent=1 // pred_check
      _
    $region11: #{tpu_custom_call.1} parent=1 // pred_check_branch
      %18 = sbr.rel (0) target = $region13
    $region12: #{tpu_custom_call.1} parent=1 // pred_region
      _
    $region13: #{tpu_custom_call.1} parent=1 // pred_fallthru
      _
    // Predicated region
    $region14: #{tpu_custom_call.1} parent=1 // pred_check
      _
    $region15: #{tpu_custom_call.1} parent=1 // pred_check_branch
      %20 = sbr.rel (0) target = $region17
    $region16: #{tpu_custom_call.1} parent=1 // pred_region
      _
    $region17: #{tpu_custom_call.1} parent=1 // pred_fallthru
      _
    // Predicated region
    $region18: #{tpu_custom_call.1} parent=1 // pred_check
      _
    $region19: #{tpu_custom_call.1} parent=1 // pred_check_branch
      %22 = sbr.rel (0) target = $region21
    $region20: #{tpu_custom_call.1} parent=1 // pred_region
      _
    $region21: #{tpu_custom_call.1} parent=1 // pred_fallthru
      _
    // Predicated region
    $region22: #{tpu_custom_call.1} parent=1 // pred_check
      _
    $region23: #{tpu_custom_call.1} parent=1 // pred_check_branch
      %24 = sbr.rel (0) target = $region25
    $region24: #{tpu_custom_call.1} parent=1 // pred_region
      _
    $region25: #{tpu_custom_call.1} parent=1 // pred_fallthru
      _
    // Predicated region
    $region26: #{tpu_custom_call.1} parent=1 // pred_check
      _
    $region27: #{tpu_custom_call.1} parent=1 // pred_check_branch
      %26 = sbr.rel (0) target = $region29
    $region28: #{tpu_custom_call.1} parent=1 // pred_region
      _
    $region29: #{tpu_custom_call.1} parent=1 // pred_fallthru
      _
    %v27 = vlaneseq
    %v28 = vshrl.u32 %v27, 7
    %v29 = vadd.s32 %v28, 8
    %v30 = vld [vmem:[%s0] sm:$0x1]
    %v31 = vlaneseq
    %v32 = vshrl.u32 %v31, 7
    %v33 = vsub.s32 0, %v32
    %v34 = vrot.slane %v30, %v33
    %vm35 = vcmp.eq.s32.totalorder %v28, %v34
    %vm36 = vcmp.eq.s32.totalorder %v29, %v34
    %v37 = vsel %vm35, 1.0, 0.0
    %v38 = vsel %vm36, 1.0, 0.0
    %v39 = vld [vmem:[%s1] sm:$0x1]
    %v40 = vlaneseq
    %v41 = vshrl.u32 %v40, 7
    %v42 = vsub.s32 0, %v41
    %v43 = vrot.slane %v39, %v42
    %vm44 = vcmp.eq.s32.totalorder %v28, %v43
    %vm45 = vcmp.eq.s32.totalorder %v29, %v43
    %v46 = vsel %vm44, 1.0, 0.0
    %v47 = vsel %vm45, 1.0, 0.0
    %v48 = vld [vmem:[%s2] sm:$0xff]
    %v49 = vld [vmem:[%s2 + $0x8] sm:$0xff]
    %v50 = vld [vmem:[%s2 + $0x10] sm:$0xff]
    %v51 = vld [vmem:[%s2 + $0x18] sm:$0xff]
    %v52 = vld [vmem:[%s3] sm:$0xff]
    %v53 = vld [vmem:[%s3 + $0x8] sm:$0xff]
    %v54 = vld [vmem:[%s3 + $0x10] sm:$0xff]
    %v55 = vld [vmem:[%s3 + $0x18] sm:$0xff]
    %vm56 = vcmask 130048
    %v58 = vsel %vm56, %v52, 0
    %v61 = vsel %vm56, %v53, 0
    %v64 = vsel %vm56, %v54, 0
    %v67 = vsel %vm56, %v55, 0
    %69 = vmatprep.subr.mxu0 0.0
    %70 = vmatpush1.msra.mxu0 %v46
    %71 = vmatprep.subr.mxu0 0.0
    %72 = vmatpush1.msra.mxu0 %v47
    %73 = vmatprep.subr.mxu0 0.0
    %74 = vmatpush1.msra.mxu0 0.0
    %75 = vmatprep.subr.mxu0 0.0
    %76 = vmatpush1.msra.mxu0 0.0
    %77 = vmatprep.subr.mxu0 0.0
    %78 = vmatpush1.msra.mxu0 0.0
    %79 = vmatprep.subr.mxu0 0.0
    %80 = vmatpush1.msra.mxu0 0.0
    %81 = vmatprep.subr.mxu0 0.0
    %82 = vmatpush1.msra.mxu0 0.0
    %83 = vmatprep.subr.mxu0 0.0
    %84 = vmatpush1.msra.mxu0 0.0
    %85 = vmatprep.subr.mxu0 0.0
    %86 = vmatpush1.msra.mxu0 0.0
    %87 = vmatprep.subr.mxu0 0.0
    %88 = vmatpush1.msra.mxu0 0.0
    %89 = vmatprep.subr.mxu0 0.0
    %90 = vmatpush1.msra.mxu0 0.0
    %91 = vmatprep.subr.mxu0 0.0
    %92 = vmatpush1.msra.mxu0 0.0
    %93 = vmatprep.subr.mxu0 0.0
    %94 = vmatpush1.msra.mxu0 0.0
    %95 = vmatprep.subr.mxu0 0.0
    %96 = vmatpush1.msra.mxu0 0.0
    %97 = vmatprep.subr.mxu0 0.0
    %98 = vmatpush1.msra.mxu0 0.0
    %99 = vmatprep.subr.mxu0 0.0
    %100 = vmatpush1.msra.mxu0 0.0
    %101 = vmatprep.subr.mxu0 0.0
    %102 = vmatpush1.msra.mxu0 0.0
    %103 = vmatprep.subr.mxu0 0.0
    %104 = vmatpush1.msra.mxu0 0.0
    %105 = vmatprep.subr.mxu0 0.0
    %106 = vmatpush1.msra.mxu0 0.0
    %107 = vmatprep.subr.mxu0 0.0
    %108 = vmatpush1.msra.mxu0 0.0
    %109 = vmatprep.subr.mxu0 0.0
    %110 = vmatpush1.msra.mxu0 0.0
    %111 = vmatprep.subr.mxu0 0.0
    %112 = vmatpush1.msra.mxu0 0.0
    %113 = vmatprep.subr.mxu0 0.0
    %114 = vmatpush1.msra.mxu0 0.0
    %115 = vmatprep.subr.mxu0 0.0
    %116 = vmatpush1.msra.mxu0 0.0
    %117 = vmatprep.subr.mxu0 0.0
    %118 = vmatpush1.msra.mxu0 0.0
    %119 = vmatprep.subr.mxu0 0.0
    %120 = vmatpush1.msra.mxu0 0.0
    %121 = vmatprep.subr.mxu0 0.0
    %122 = vmatpush1.msra.mxu0 0.0
    %123 = vmatprep.subr.mxu0 0.0
    %124 = vmatpush1.msra.mxu0 0.0
    %125 = vmatprep.subr.mxu0 0.0
    %126 = vmatpush1.msra.mxu0 0.0
    %127 = vmatprep.subr.mxu0 0.0
    %128 = vmatpush1.msra.mxu0 0.0
    %129 = vmatprep.subr.mxu0 0.0
    %130 = vmatpush1.msra.mxu0 0.0
    %131 = vmatprep.subr.mxu0 0.0
    %132 = vmatpush1.msra.mxu0 0.0
    %133 = vmatprep.mubr.f32.mxu0 0.0
    %134 = vmatmul.mubr.f32.gmra.mrb[0].mxu0 %v58
    %v135 = vpop.f32.mrb[0].mxu0
    %v136 = vadd.f32 0.0, %v135
    %v137 = vpop.f32.mrb[0].mxu0
    %138 = vmatprep.mubr.f32.mxu0 0.0
    %139 = vmatmul.mubr.f32.gmra.mrb[0].mxu0 %v61
    %v140 = vpop.f32.mrb[0].mxu0
    %v141 = vadd.f32 0.0, %v140
    %v142 = vpop.f32.mrb[0].mxu0
    %143 = vmatprep.mubr.f32.mxu0 0.0
    %144 = vmatmul.mubr.f32.gmra.mrb[0].mxu0 %v64
    %v145 = vpop.f32.mrb[0].mxu0
    %v146 = vadd.f32 0.0, %v145
    %v147 = vpop.f32.mrb[0].mxu0
    %148 = vmatprep.mubr.f32.mxu0 0.0
    %149 = vmatmul.mubr.f32.gmra.mrb[0].mxu0 %v67
    %v150 = vpop.f32.mrb[0].mxu0
    %v151 = vadd.f32 0.0, %v150
    %v152 = vpop.f32.mrb[0].mxu0
    %153 = vdwg.mxu0
    %v155 = vsel %vm56, %v48, 0
    %v158 = vsel %vm56, %v49, 0
    %v161 = vsel %vm56, %v50, 0
    %v164 = vsel %vm56, %v51, 0
    %166 = vmatprep.subr.mxu0 0.0
    %167 = vmatpush1.msra.mxu0 %v37
    %168 = vmatprep.subr.mxu0 0.0
    %169 = vmatpush1.msra.mxu0 %v38
    %170 = vmatprep.subr.mxu0 0.0
    %171 = vmatpush1.msra.mxu0 0.0
    %172 = vmatprep.subr.mxu0 0.0
    %173 = vmatpush1.msra.mxu0 0.0
    %174 = vmatprep.subr.mxu0 0.0
    %175 = vmatpush1.msra.mxu0 0.0
    %176 = vmatprep.subr.mxu0 0.0
    %177 = vmatpush1.msra.mxu0 0.0
    %178 = vmatprep.subr.mxu0 0.0
    %179 = vmatpush1.msra.mxu0 0.0
    %180 = vmatprep.subr.mxu0 0.0
    %181 = vmatpush1.msra.mxu0 0.0
    %182 = vmatprep.subr.mxu0 0.0
    %183 = vmatpush1.msra.mxu0 0.0
    %184 = vmatprep.subr.mxu0 0.0
    %185 = vmatpush1.msra.mxu0 0.0
    %186 = vmatprep.subr.mxu0 0.0
    %187 = vmatpush1.msra.mxu0 0.0
    %188 = vmatprep.subr.mxu0 0.0
    %189 = vmatpush1.msra.mxu0 0.0
    %190 = vmatprep.subr.mxu0 0.0
    %191 = vmatpush1.msra.mxu0 0.0
    %192 = vmatprep.subr.mxu0 0.0
    %193 = vmatpush1.msra.mxu0 0.0
    %194 = vmatprep.subr.mxu0 0.0
    %195 = vmatpush1.msra.mxu0 0.0
    %196 = vmatprep.subr.mxu0 0.0
    %197 = vmatpush1.msra.mxu0 0.0
    %198 = vmatprep.subr.mxu0 0.0
    %199 = vmatpush1.msra.mxu0 0.0
    %200 = vmatprep.subr.mxu0 0.0
    %201 = vmatpush1.msra.mxu0 0.0
    %202 = vmatprep.subr.mxu0 0.0
    %203 = vmatpush1.msra.mxu0 0.0
    %204 = vmatprep.subr.mxu0 0.0
    %205 = vmatpush1.msra.mxu0 0.0
    %206 = vmatprep.subr.mxu0 0.0
    %207 = vmatpush1.msra.mxu0 0.0
    %208 = vmatprep.subr.mxu0 0.0
    %209 = vmatpush1.msra.mxu0 0.0
    %210 = vmatprep.subr.mxu0 0.0
    %211 = vmatpush1.msra.mxu0 0.0
    %212 = vmatprep.subr.mxu0 0.0
    %213 = vmatpush1.msra.mxu0 0.0
    %214 = vmatprep.subr.mxu0 0.0
    %215 = vmatpush1.msra.mxu0 0.0
    %216 = vmatprep.subr.mxu0 0.0
    %217 = vmatpush1.msra.mxu0 0.0
    %218 = vmatprep.subr.mxu0 0.0
    %219 = vmatpush1.msra.mxu0 0.0
    %220 = vmatprep.subr.mxu0 0.0
    %221 = vmatpush1.msra.mxu0 0.0
    %222 = vmatprep.subr.mxu0 0.0
    %223 = vmatpush1.msra.mxu0 0.0
    %224 = vmatprep.subr.mxu0 0.0
    %225 = vmatpush1.msra.mxu0 0.0
    %226 = vmatprep.subr.mxu0 0.0
    %227 = vmatpush1.msra.mxu0 0.0
    %228 = vmatprep.subr.mxu0 0.0
    %229 = vmatpush1.msra.mxu0 0.0
    %230 = vmatprep.mubr.f32.mxu0 0.0
    %231 = vmatmul.mubr.f32.gmra.mrb[0].mxu0 %v155
    %v232 = vpop.f32.mrb[0].mxu0
    %v233 = vadd.f32 %v136, %v232
    %v234 = vpop.f32.mrb[0].mxu0
    %235 = vmatprep.mubr.f32.mxu0 0.0
    %236 = vmatmul.mubr.f32.gmra.mrb[0].mxu0 %v158
    %v237 = vpop.f32.mrb[0].mxu0
    %v238 = vadd.f32 %v141, %v237
    %v239 = vpop.f32.mrb[0].mxu0
    %240 = vmatprep.mubr.f32.mxu0 0.0
    %241 = vmatmul.mubr.f32.gmra.mrb[0].mxu0 %v161
    %v242 = vpop.f32.mrb[0].mxu0
    %v243 = vadd.f32 %v146, %v242
    %v244 = vpop.f32.mrb[0].mxu0
    %245 = vmatprep.mubr.f32.mxu0 0.0
    %246 = vmatmul.mubr.f32.gmra.mrb[0].mxu0 %v164
    %v247 = vpop.f32.mrb[0].mxu0
    %v248 = vadd.f32 %v151, %v247
    %v249 = vpop.f32.mrb[0].mxu0
    %250 = vdwg.mxu0
    %v251 = vmax.f32 %v233, 0.0
    %v252 = vmax.f32 %v238, 0.0
    %v253 = vmax.f32 %v243, 0.0
    %v254 = vmax.f32 %v248, 0.0
    %v255 = vld [vmem:[%s4] sm:$0xff]
    %v256 = vld [vmem:[%s4 + $0x8] sm:$0xff]
    %v257 = vld [vmem:[%s5] sm:$0xff]
    %v258 = vld [vmem:[%s5 + $0x8] sm:$0xff]
    %260 = vset.pattern.permute.xlu0 0
    %261 = vperm.xlu0 %260, %v257
    %v262 = vpop.permute.xlu0 %261
    %265 = vset.pattern.permute.xlu0 0
    %266 = vperm.xlu0 %265, %v258
    %v267 = vpop.permute.xlu0 %266
    %vm269 = vcmask 261120
    %v271 = vsel %vm269, %v255, 0
    %v274 = vsel %vm269, %v256, 0
    %276 = vmatprep.subr.mxu0 0.0
    %277 = vmatpush1.msra.mxu0 %v251
    %278 = vmatprep.subr.mxu0 0.0
    %279 = vmatpush1.msra.mxu0 %v252
    %280 = vmatprep.subr.mxu0 0.0
    %281 = vmatpush1.msra.mxu0 %v253
    %282 = vmatprep.subr.mxu0 0.0
    %283 = vmatpush1.msra.mxu0 %v254
    %284 = vmatprep.subr.mxu0 0.0
    %285 = vmatpush1.msra.mxu0 0.0
    %286 = vmatprep.subr.mxu0 0.0
    %287 = vmatpush1.msra.mxu0 0.0
    %288 = vmatprep.subr.mxu0 0.0
    %289 = vmatpush1.msra.mxu0 0.0
    %290 = vmatprep.subr.mxu0 0.0
    %291 = vmatpush1.msra.mxu0 0.0
    %292 = vmatprep.subr.mxu0 0.0
    %293 = vmatpush1.msra.mxu0 0.0
    %294 = vmatprep.subr.mxu0 0.0
    %295 = vmatpush1.msra.mxu0 0.0
    %296 = vmatprep.subr.mxu0 0.0
    %297 = vmatpush1.msra.mxu0 0.0
    %298 = vmatprep.subr.mxu0 0.0
    %299 = vmatpush1.msra.mxu0 0.0
    %300 = vmatprep.subr.mxu0 0.0
    %301 = vmatpush1.msra.mxu0 0.0
    %302 = vmatprep.subr.mxu0 0.0
    %303 = vmatpush1.msra.mxu0 0.0
    %304 = vmatprep.subr.mxu0 0.0
    %305 = vmatpush1.msra.mxu0 0.0
    %306 = vmatprep.subr.mxu0 0.0
    %307 = vmatpush1.msra.mxu0 0.0
    %308 = vmatprep.subr.mxu0 0.0
    %309 = vmatpush1.msra.mxu0 0.0
    %310 = vmatprep.subr.mxu0 0.0
    %311 = vmatpush1.msra.mxu0 0.0
    %312 = vmatprep.subr.mxu0 0.0
    %313 = vmatpush1.msra.mxu0 0.0
    %314 = vmatprep.subr.mxu0 0.0
    %315 = vmatpush1.msra.mxu0 0.0
    %316 = vmatprep.subr.mxu0 0.0
    %317 = vmatpush1.msra.mxu0 0.0
    %318 = vmatprep.subr.mxu0 0.0
    %319 = vmatpush1.msra.mxu0 0.0
    %320 = vmatprep.subr.mxu0 0.0
    %321 = vmatpush1.msra.mxu0 0.0
    %322 = vmatprep.subr.mxu0 0.0
    %323 = vmatpush1.msra.mxu0 0.0
    %324 = vmatprep.subr.mxu0 0.0
    %325 = vmatpush1.msra.mxu0 0.0
    %326 = vmatprep.subr.mxu0 0.0
    %327 = vmatpush1.msra.mxu0 0.0
    %328 = vmatprep.subr.mxu0 0.0
    %329 = vmatpush1.msra.mxu0 0.0
    %330 = vmatprep.subr.mxu0 0.0
    %331 = vmatpush1.msra.mxu0 0.0
    %332 = vmatprep.subr.mxu0 0.0
    %333 = vmatpush1.msra.mxu0 0.0
    %334 = vmatprep.subr.mxu0 0.0
    %335 = vmatpush1.msra.mxu0 0.0
    %336 = vmatprep.subr.mxu0 0.0
    %337 = vmatpush1.msra.mxu0 0.0
    %338 = vmatprep.subr.mxu0 0.0
    %339 = vmatpush1.msra.mxu0 0.0
    %340 = vmatprep.mubr.f32.mxu0 0.0
    %341 = vmatmul.mubr.f32.gmra.mrb[0].mxu0 %v271
    %v342 = vpop.f32.mrb[0].mxu0
    %v343 = vadd.f32 %v262, %v342
    %v344 = vpop.f32.mrb[0].mxu0
    %345 = vmatprep.mubr.f32.mxu0 0.0
    %346 = vmatmul.mubr.f32.gmra.mrb[0].mxu0 %v274
    %v347 = vpop.f32.mrb[0].mxu0
    %v348 = vadd.f32 %v267, %v347
    %v349 = vpop.f32.mrb[0].mxu0
    %350 = vdwg.mxu0
    %v351 = vmax.f32 %v343, 0.0
    %v352 = vmax.f32 %v348, 0.0
    %v353 = vld [vmem:[%s6] sm:$0x1]
    %v355 = vsel %vm56, %v353, 0
    %357 = vmatprep.subr.mxu0 0.0
    %358 = vmatpush1.msra.mxu0 %v351
    %359 = vmatprep.subr.mxu0 0.0
    %360 = vmatpush1.msra.mxu0 %v352
    %361 = vmatprep.subr.mxu0 0.0
    %362 = vmatpush1.msra.mxu0 0.0
    %363 = vmatprep.subr.mxu0 0.0
    %364 = vmatpush1.msra.mxu0 0.0
    %365 = vmatprep.subr.mxu0 0.0
    %366 = vmatpush1.msra.mxu0 0.0
    %367 = vmatprep.subr.mxu0 0.0
    %368 = vmatpush1.msra.mxu0 0.0
    %369 = vmatprep.subr.mxu0 0.0
    %370 = vmatpush1.msra.mxu0 0.0
    %371 = vmatprep.subr.mxu0 0.0
    %372 = vmatpush1.msra.mxu0 0.0
    %373 = vmatprep.subr.mxu0 0.0
    %374 = vmatpush1.msra.mxu0 0.0
    %375 = vmatprep.subr.mxu0 0.0
    %376 = vmatpush1.msra.mxu0 0.0
    %377 = vmatprep.subr.mxu0 0.0
    %378 = vmatpush1.msra.mxu0 0.0
    %379 = vmatprep.subr.mxu0 0.0
    %380 = vmatpush1.msra.mxu0 0.0
    %381 = vmatprep.subr.mxu0 0.0
    %382 = vmatpush1.msra.mxu0 0.0
    %383 = vmatprep.subr.mxu0 0.0
    %384 = vmatpush1.msra.mxu0 0.0
    %385 = vmatprep.subr.mxu0 0.0
    %386 = vmatpush1.msra.mxu0 0.0
    %387 = vmatprep.subr.mxu0 0.0
    %388 = vmatpush1.msra.mxu0 0.0
    %389 = vmatprep.subr.mxu0 0.0
    %390 = vmatpush1.msra.mxu0 0.0
    %391 = vmatprep.subr.mxu0 0.0
    %392 = vmatpush1.msra.mxu0 0.0
    %393 = vmatprep.subr.mxu0 0.0
    %394 = vmatpush1.msra.mxu0 0.0
    %395 = vmatprep.subr.mxu0 0.0
    %396 = vmatpush1.msra.mxu0 0.0
    %397 = vmatprep.subr.mxu0 0.0
    %398 = vmatpush1.msra.mxu0 0.0
    %399 = vmatprep.subr.mxu0 0.0
    %400 = vmatpush1.msra.mxu0 0.0
    %401 = vmatprep.subr.mxu0 0.0
    %402 = vmatpush1.msra.mxu0 0.0
    %403 = vmatprep.subr.mxu0 0.0
    %404 = vmatpush1.msra.mxu0 0.0
    %405 = vmatprep.subr.mxu0 0.0
    %406 = vmatpush1.msra.mxu0 0.0
    %407 = vmatprep.subr.mxu0 0.0
    %408 = vmatpush1.msra.mxu0 0.0
    %409 = vmatprep.subr.mxu0 0.0
    %410 = vmatpush1.msra.mxu0 0.0
    %411 = vmatprep.subr.mxu0 0.0
    %412 = vmatpush1.msra.mxu0 0.0
    %413 = vmatprep.subr.mxu0 0.0
    %414 = vmatpush1.msra.mxu0 0.0
    %415 = vmatprep.subr.mxu0 0.0
    %416 = vmatpush1.msra.mxu0 0.0
    %417 = vmatprep.subr.mxu0 0.0
    %418 = vmatpush1.msra.mxu0 0.0
    %419 = vmatprep.subr.mxu0 0.0
    %420 = vmatpush1.msra.mxu0 0.0
    %421 = vmatprep.mubr.f32.mxu0 0.0
    %422 = vmatmul.mubr.f32.gmra.mrb[0].mxu0 %v355
    %v423 = vpop.f32.mrb[0].mxu0
    %v424 = vadd.f32 0.0, %v423
    %v425 = vpop.f32.mrb[0].mxu0
    %426 = vdwg.mxu0
    %427 = vst [vmem:[#allocation2] sm:$0x1] %v424
    // Predicated region
    $region30: #{tpu_custom_call.1} parent=1 // pred_check
      _
    $region31: #{tpu_custom_call.1} parent=1 // pred_check_branch
      %429 = sbr.rel (0) target = $region33
    $region32: #{tpu_custom_call.1} parent=1 // pred_region
      %s431 = ssub.s32 16, 16
      %432 = vsyncadd [#allocation3], %s431
      %s434 = sshll.u32 [#allocation2], 4
      %s435 = int_to_ptr.vmem [resolvable:$true] %s434
      %437 = dma.vmem_to_hbm [thread:$0]  %s435, 16, %s7, [#allocation3]
    $region33: #{tpu_custom_call.1} parent=1 // pred_fallthru
      _
    // Predicated region
    $region34: #{tpu_custom_call.1} parent=1 // pred_check
      _
    $region35: #{tpu_custom_call.1} parent=1 // pred_check_branch
      %439 = sbr.rel (0) target = $region37
    $region36: #{tpu_custom_call.1} parent=1 // pred_region
      %440 = dma.done [#allocation3], 16
    $region37: #{tpu_custom_call.1} parent=1 // pred_fallthru
      _
    %441 = vsyncpa [#allocation3], 1

</llo_original>
